<compile_context>
chip_gen: v7x
topology: tpu7x:2x2x1
jax: 0.10.0
libtpu: 0.0.40
codegen_flags: <defaults>
</compile_context>

<pallas_src>
import functools

import jax
import jax.numpy as jnp
from jax.experimental import pallas as pl
from jax.experimental.pallas import tpu as pltpu

C_IN = 16                      # 4 ** px_num input channels (px_num = 2)
C_OUT = 16                     # output channels actually filled by the reference loop
_LANE = 128
_MIB = 1024 * 1024


def _round_up(x, m):
    return ((x + m - 1) // m) * m


@functools.lru_cache(maxsize=1)
def _chip_defaults():
    """Return (target_lane_tile, vmem_limit_bytes_or_None, two_tensorcores)."""
    try:
        kind = jax.devices()[0].device_kind.lower()
    except Exception:  # pragma: no cover - defensive (interpret / CPU fallback)
        kind = ""
    if "v7" in kind:
        # v7x: ~3.2 TB/s HBM, 64 MiB VMEM/TC (32 MiB scoped default). 8 MiB blocks
        # amortize the ~0.35 us/step overhead; raise scoped VMEM so the 4-block
        # (in+out, double-buffered) 32 MiB working set fits with headroom.
        return 128 * 1024, 48 * _MIB, True
    if "v6" in kind:
        # v6e: 4 MiB blocks -> 16 MiB working set, inside the 32 MiB scoped default.
        return 64 * 1024, None, False
    # v5e / unknown: stay under the 16 MiB scoped-VMEM default (8 MiB working set).
    return 32 * 1024, None, False


def _pick_lane_tile(hw, target, batch, want_even_steps):
    """Balanced, 128-aligned pixel tile (or full hw) and the resulting tile count."""
    target = max(int(target), _LANE)            # clamp: never a degenerate 0-wide tile
    if hw <= target:
        t, n_t = hw, 1                          # full-extent last dim (always legal)
    else:
        n_t = pl.cdiv(hw, target)
        # Balance tiles instead of target-sized tiles + a nearly empty ragged tail.
        t = min(hw, _round_up(pl.cdiv(hw, n_t), _LANE))
        n_t = pl.cdiv(hw, t)
    if want_even_steps and (batch * n_t) % 2 == 1 and n_t < pl.cdiv(hw, _LANE):
        # v7x megacore shards the parallel grid across 2 TensorCores; prefer an even
        # total step count so neither core carries a whole extra block of tail latency.
        t2 = min(hw, _round_up(pl.cdiv(hw, n_t + 1), _LANE))
        n_t2 = pl.cdiv(hw, t2)
        if (batch * n_t2) % 2 == 0:
            t, n_t = t2, n_t2
    return t, n_t


def build_cfan(w):
    """Expand the 4x4 CFA into the (16, 16) 1x1-conv mixing matrix.

    cfan[i*4 + j, k*4 + j] = w[i, k]  ==  kron(w, I_4).
    """
    return jnp.kron(w, jnp.eye(4, dtype=w.dtype))


def _color_transfer_kernel(cfan_ref, x_ref, o_ref):
    # cfan_ref: (16, 16) mixing matrix (constant index_map -> VMEM resident).
    # x_ref / o_ref: (1, 16, T) lane-dense pixel blocks.
    o_ref[0] = jnp.dot(
        cfan_ref[...], x_ref[0], preferred_element_type=jnp.float32
    ).astype(o_ref.dtype)


@functools.partial(
    jax.jit,
    static_argnames=("target_lane_tile", "min_pallas_bytes", "force_pallas"),
)
def color_transfer(x_nchw, w, *, target_lane_tile=None,
                   min_pallas_bytes=512 * 1024, force_pallas=False):
    """Pallas implementation of ColorTransfer.forward.

    x_nchw: (N, 16, H, W) float32
    w:      (4, 4) float32 (the `cfa` parameter)
    returns (N, 16, H, W) float32
    """
    N, C, H, W = x_nchw.shape
    assert C == C_IN, f"expected {C_IN} input channels, got {C}"
    HW = H * W

    cfan = build_cfan(w)                        # (C_out, C_in)

    total_bytes = x_nchw.size * x_nchw.dtype.itemsize
    if not force_pallas and total_bytes < min_pallas_bytes:
        # Tiny inputs: pallas_call launch + ~0.35 us pipeline steps dominate; XLA's
        # fused einsum (identical math) is strictly faster.
        return jnp.einsum("oc,nchw->nohw", cfan, x_nchw,
                          precision=jax.lax.Precision.HIGHEST)

    chip_target, vmem_limit, two_tc = _chip_defaults()
    target = chip_target if target_lane_tile is None else target_lane_tile
    T, n_t = _pick_lane_tile(HW, target, N, two_tc)

    x3 = x_nchw.reshape(N, C_IN, HW)            # free reshape, no transpose

    compiler_kwargs = dict(dimension_semantics=("parallel", "parallel"))
    if vmem_limit is not None:
        compiler_kwargs["vmem_limit_bytes"] = vmem_limit

    out3 = pl.pallas_call(
        _color_transfer_kernel,
        out_shape=jax.ShapeDtypeStruct((N, C_OUT, HW), x_nchw.dtype),
        grid=(N, n_t),
        in_specs=[
            pl.BlockSpec((C_OUT, C_IN), lambda b, t: (0, 0)),
            pl.BlockSpec((1, C_IN, T), lambda b, t: (b, 0, t)),
        ],
        out_specs=pl.BlockSpec((1, C_OUT, T), lambda b, t: (b, 0, t)),
        compiler_params=pltpu.CompilerParams(**compiler_kwargs),
    )(cfan, x3)

    return out3.reshape(N, C_OUT, H, W)         # free reshape back to NCHW


def color_transfer_ref(x_nchw, w):
    """Pure-JAX reference matching F.conv2d(x, cfan, stride=1, pad=0)."""
    cfan = build_cfan(w)
    return jnp.einsum("nchw,oc->nohw", x_nchw, cfan,
                      precision=jax.lax.Precision.HIGHEST)


if __name__ == "__main__":
    key = jax.random.PRNGKey(0)
    kx, kw, kx2, kx3 = jax.random.split(key, 4)

    # Deterministic CFA parameter (the nn.Parameter `w` of shape (4, 4)).
    w = (jnp.arange(16, dtype=jnp.float32).reshape(4, 4) / 16.0
         + 0.1 * jax.random.normal(kw, (4, 4), dtype=jnp.float32))

    # 1) Main small case (batch=2, 16 channels, 16x16), forced through the Pallas path.
    x = jax.random.normal(kx, (2, C_IN, 16, 16), dtype=jnp.float32)
    out = jax.block_until_ready(color_transfer(x, w, force_pallas=True))
    ref = color_transfer_ref(x, w)
    assert out.shape == (2, C_OUT, 16, 16), out.shape
    assert jnp.allclose(out, ref, atol=1e-5, rtol=1e-5), (
        float(jnp.max(jnp.abs(out - ref))))

    # 2) Same input via the default dispatch: small-input fast path (fused einsum).
    out_fast = jax.block_until_ready(color_transfer(x, w))
    assert jnp.allclose(out_fast, ref, atol=1e-5, rtol=1e-5), (
        float(jnp.max(jnp.abs(out_fast - ref))))

    # 3) Moderate case (~1 MiB) that takes the Pallas path via the size threshold.
    x3 = jax.random.normal(kx3, (1, C_IN, 96, 160), dtype=jnp.float32)
    out3 = jax.block_until_ready(color_transfer(x3, w))
    ref3 = color_transfer_ref(x3, w)
    assert out3.shape == (1, C_OUT, 96, 160), out3.shape
    assert jnp.allclose(out3, ref3, atol=1e-5, rtol=1e-5), (
        float(jnp.max(jnp.abs(out3 - ref3))))

    # 4) Odd spatial size, forced small lane tile: multi-tile grid with a masked
    #    partial last tile, exercising balanced tiling + the pl.cdiv path.
    x2 = jax.random.normal(kx2, (1, C_IN, 24, 25), dtype=jnp.float32)  # HW = 600
    out2 = jax.block_until_ready(
        color_transfer(x2, w, target_lane_tile=256, force_pallas=True))
    ref2 = color_transfer_ref(x2, w)
    assert out2.shape == (1, C_OUT, 24, 25), out2.shape
    assert jnp.allclose(out2, ref2, atol=1e-5, rtol=1e-5), (
        float(jnp.max(jnp.abs(out2 - ref2))))

    print("KERNEL_OK")
</pallas_src>

<mosaic_0001>
module attributes {stable_mosaic.version = 11 : i64} {
  func.func @_color_transfer_kernel(%arg0: i32, %arg1: i32, %arg2: memref<16x16xf32, #tpu.memory_space<vmem>>, %arg3: memref<1x16x256xf32, #tpu.memory_space<vmem>>, %arg4: memref<1x16x256xf32, #tpu.memory_space<vmem>>) attributes {dimension_semantics = [#tpu.dimension_semantics<parallel>, #tpu.dimension_semantics<parallel>], iteration_bounds = array<i64: 2, 1>, scalar_prefetch = 0 : i64, scratch_operands = 0 : i64, tpu.core_type = #tpu.core_type<tc>, window_params = [{pipeline_mode = #tpu.pipeline_mode<synchronous>, transform_indices = @transform_0, window_bounds = array<i64: 16, 16>}, {transform_indices = @transform_1, window_bounds = array<i64: 1, 16, 256>}, {transform_indices = @transform_2, window_bounds = array<i64: 1, 16, 256>}]} {
    %c0 = arith.constant 0 : index
    %c0_0 = arith.constant 0 : index
    %0 = vector.load %arg2[%c0, %c0_0] : memref<16x16xf32, #tpu.memory_space<vmem>>, vector<16x16xf32>
    %c0_1 = arith.constant 0 : index
    %c0_2 = arith.constant 0 : index
    %c0_3 = arith.constant 0 : index
    %1 = vector.load %arg3[%c0_1, %c0_2, %c0_3] : memref<1x16x256xf32, #tpu.memory_space<vmem>>, vector<1x16x256xf32>
    %2 = vector.shape_cast %1 : vector<1x16x256xf32> to vector<16x256xf32>
    %cst = arith.constant dense<0.000000e+00> : vector<16x256xf32>
    %3 = tpu.matmul %0, %2, %cst {dimension_numbers = #tpu.dot_dimension_numbers<[1], [0], [0], [1], [0, 0, 1, 1], [], []>} : vector<16x16xf32>, vector<16x256xf32>, vector<16x256xf32> -> vector<16x256xf32>
    %c0_4 = arith.constant 0 : index
    %c0_5 = arith.constant 0 : index
    %c0_6 = arith.constant 0 : index
    %4 = vector.load %arg4[%c0_4, %c0_5, %c0_6] : memref<1x16x256xf32, #tpu.memory_space<vmem>>, vector<1x16x256xf32>
    %5 = vector.shape_cast %4 : vector<1x16x256xf32> to vector<16x256xf32>
    %6 = vector.shape_cast %3 : vector<16x256xf32> to vector<1x16x256xf32>
    tpu.vector_store %arg4[%c0_4, %c0_5, %c0_6], %6 {strides = array<i32>} : memref<1x16x256xf32, #tpu.memory_space<vmem>>, vector<1x16x256xf32>,
    return
  }
  func.func @transform_0(%arg0: i32, %arg1: i32) -> (i32, i32) {
    %c0_i32 = arith.constant 0 : i32
    %c0_i32_0 = arith.constant 0 : i32
    %c0_i32_1 = arith.constant 0 : i32
    return %c0_i32, %c0_i32_0 : i32, i32
  }
  func.func @transform_1(%arg0: i32, %arg1: i32) -> (i32, i32, i32) {
    %c0_i32 = arith.constant 0 : i32
    %c0_i32_0 = arith.constant 0 : i32
    return %arg0, %c0_i32, %arg1 : i32, i32, i32
  }
  func.func @transform_2(%arg0: i32, %arg1: i32) -> (i32, i32, i32) {
    %c0_i32 = arith.constant 0 : i32
    %c0_i32_0 = arith.constant 0 : i32
    return %arg0, %c0_i32, %arg1 : i32, i32, i32
  }
}

</mosaic_0001>

<llo_original>
// kernel: color_transfer.1
$region0: #{color_transfer.1}
  #allocation0 [shape = 'u32[]', space=smem, size = 0x4, offset = 0x4, fixed_abs, tag = 'smem constant byte address 0x4 - core index']
  #allocation1 [shape = 'u32[144,128]{1,0:T(1,128)}', space=vmem, size = 0x12000, scoped, tag = 'internal scratch']
  %s0 = inlined_call_operand.vmem [shape: f32[16,16], index: 0, kind: input, shape index: {}]
  %s1 = inlined_call_operand.vmem [shape: f32[2,16,256], index: 1, kind: input, shape index: {}]
  %s2 = inlined_call_operand.vmem [shape: f32[2,16,256], index: 2, kind: output, shape index: {}]
  %s3 = sld [smem:[#allocation0]]
  $region41: #{color_transfer.1} parent=0
    _
  %s5 = ssub.s32 1, %s3
  %s6 = scalar_select 0, %s5, %s3
  loop: start=0, step=1, limit=4
  $region2: #{color_transfer.1} parent=0 // loop_pre_header
    _
  $region3: #{color_transfer.1} parent=0 // loop_header
    %s8 = sphi 0, %s12
    %p9 = scmp.ge.s32.totalorder %s8, 4
    %s15 = sphi 0, %s27
    %s16 = sphi 0, %s23
    %s17 = sphi 0, %s15
    %s18 = sphi 0, %s16
    %s19 = sphi 0, %s17
    %s20 = sphi 0, %s18
    %s28 = sphi 0, %s28
    %s30 = sphi 0, %s28
    %s31 = sphi 0, %s30
    %s45 = sphi 0, %s31
    %s53 = sphi 0, %s55
    %s56 = sphi 0, %s53
    %s57 = sphi 0, %s56
    %s73 = sphi 0, %s57
    %s81 = sphi 0, %s83
    %s84 = sphi 0, %s81
    %s85 = sphi 0, %s84
    %s101 = sphi 0, %s85
  $region4: #{color_transfer.1} parent=0 // loop_header_branch
    %11 = sbr.rel (%p9) target = $region8
  $region5: #{color_transfer.1} parent=0 // loop_body
    %s13 = ssub.s32 %s8, 1
    %s14 = ssub.s32 %s8, 2
    %s21 = sadd.s32 1, %s16
    %p22 = scmp.ge.s32.totalorder %s21, 1
    %s23 = scalar_select %p22, 0, %s21
    %s24 = sadd.s32 1, %s15
    %s25 = scalar_select %p22, %s24, %s15
    %p26 = scmp.ge.s32.totalorder %s25, 2
    %s27 = scalar_select %p26, 0, %s25
    %s29 = sadd.s32 %s28, 1
    %p32 = scmp.eq.s32.totalorder %s8, 1
    %p33 = scmp.ne.s32.totalorder %s28, %s30
    %p34 = scmp.eq.s32.totalorder %s8, 0
    %p35 = por %p33, %p34
    %p36 = scmp.ne.s32.totalorder %s28, %s30
    %p37 = scmp.eq.s32.totalorder %s13, 1
    %p38 = por %p36, %p37
    %p39 = scmp.ne.s32.totalorder %s30, %s31
    %p40 = scmp.eq.s32.totalorder %s13, 0
    %p41 = por %p39, %p40
    %p42 = scmp.ne.s32.totalorder %s30, %s31
    %p43 = scmp.eq.s32.totalorder %s14, 1
    %p44 = por %p42, %p43
    %p46 = scmp.ne.s32.totalorder %s31, %s45
    %p47 = scmp.eq.s32.totalorder %s14, 0
    %p48 = por %p46, %p47
    %s49 = ssub.s32 %s15, %s27
    %s50 = ssub.s32 %s16, %s23
    %s51 = sor.u32 %s49, %s50
    %p52 = scmp.eq.s32.totalorder %s51, 0
    %s54 = sadd.s32 %s53, 1
    %s55 = scalar_select %p52, %s53, %s54
    %p58 = pneg %p52
    %p59 = scmp.eq.s32.totalorder %s8, 1
    %p60 = por %p58, %p59
    %p61 = scmp.ne.s32.totalorder %s53, %s56
    %p62 = scmp.eq.s32.totalorder %s8, 0
    %p63 = por %p61, %p62
    %p64 = scmp.ne.s32.totalorder %s53, %s56
    %p65 = scmp.eq.s32.totalorder %s13, 1
    %p66 = por %p64, %p65
    %p67 = scmp.ne.s32.totalorder %s56, %s57
    %p68 = scmp.eq.s32.totalorder %s13, 0
    %p69 = por %p67, %p68
    %p70 = scmp.ne.s32.totalorder %s56, %s57
    %p71 = scmp.eq.s32.totalorder %s14, 1
    %p72 = por %p70, %p71
    %p74 = scmp.ne.s32.totalorder %s57, %s73
    %p75 = scmp.eq.s32.totalorder %s14, 0
    %p76 = por %p74, %p75
    %s77 = ssub.s32 %s15, %s27
    %s78 = ssub.s32 %s16, %s23
    %s79 = sor.u32 %s77, %s78
    %p80 = scmp.eq.s32.totalorder %s79, 0
    %s82 = sadd.s32 %s81, 1
    %s83 = scalar_select %p80, %s81, %s82
    %p86 = pneg %p80
    %p87 = scmp.eq.s32.totalorder %s8, 1
    %p88 = por %p86, %p87
    %p89 = scmp.ne.s32.totalorder %s81, %s84
    %p90 = scmp.eq.s32.totalorder %s8, 0
    %p91 = por %p89, %p90
    %p92 = scmp.ne.s32.totalorder %s81, %s84
    %p93 = scmp.eq.s32.totalorder %s13, 1
    %p94 = por %p92, %p93
    %p95 = scmp.ne.s32.totalorder %s84, %s85
    %p96 = scmp.eq.s32.totalorder %s13, 0
    %p97 = por %p95, %p96
    %p98 = scmp.ne.s32.totalorder %s84, %s85
    %p99 = scmp.eq.s32.totalorder %s14, 1
    %p100 = por %p98, %p99
    %p102 = scmp.ne.s32.totalorder %s85, %s101
    %p103 = scmp.eq.s32.totalorder %s14, 0
    %p104 = por %p102, %p103
    %p105 = scmp.le.s32.totalorder 1, %s8
    %p106 = scmp.lt.s32.totalorder %s8, 3
    %p107 = pnand %p105, %p106
    %p108 = pneg %p107
    // Predicated region
    $region9: #{color_transfer.1} parent=5 // pred_check
      _
    $region10: #{color_transfer.1} parent=5 // pred_check_branch
      %110 = sbr.rel (%p107) target = $region12
    $region11: #{color_transfer.1} parent=5 // pred_region
      %s111 = ssub.s32 %s8, 1
      // Predicated region
      $region13: #{color_transfer.1} parent=11 // pred_check
        %p112 = pneg %p41
      $region14: #{color_transfer.1} parent=11 // pred_check_branch
        %114 = sbr.rel (%p112) target = $region16
      $region15: #{color_transfer.1} parent=11 // pred_region
        _
      $region16: #{color_transfer.1} parent=11 // pred_fallthru
        _
    $region12: #{color_transfer.1} parent=5 // pred_fallthru
      _
    %p115 = scmp.lt.s32.totalorder %s8, 2
    // Predicated region
    $region17: #{color_transfer.1} parent=5 // pred_check
      %p116 = pneg %p115
    $region18: #{color_transfer.1} parent=5 // pred_check_branch
      %118 = sbr.rel (%p116) target = $region20
    $region19: #{color_transfer.1} parent=5 // pred_region
      // Predicated region
      $region21: #{color_transfer.1} parent=19 // pred_check
        %p119 = pneg %p63
      $region22: #{color_transfer.1} parent=19 // pred_check_branch
        %121 = sbr.rel (%p119) target = $region24
      $region23: #{color_transfer.1} parent=19 // pred_region
        %s122 = smul.u32 2, %s16
        %p123 = scmp.lt.s32.totalorder %s15, 1
        %s124 = scalar_select %p123, %s15, 1
        %p125 = scmp.lt.s32.totalorder %s122, 1
        %s126 = scalar_select %p125, %s122, 1
        %s127 = smul.addr %s124, 4
        %s128 = sadd.s32 %s126, %s127
        %s129 = smul.addr %s128, 8
        %s130 = scalar_lea.vmem %s1, %s129
        %s131 = smul.u32 2, %s16
      $region24: #{color_transfer.1} parent=19 // pred_fallthru
        _
    $region20: #{color_transfer.1} parent=5 // pred_fallthru
      _
    %p132 = scmp.le.s32.totalorder 1, %s8
    %p133 = scmp.lt.s32.totalorder %s8, 3
    %p134 = pnand %p132, %p133
    %p135 = pneg %p134
    // Predicated region
    $region25: #{color_transfer.1} parent=5 // pred_check
      _
    $region26: #{color_transfer.1} parent=5 // pred_check_branch
      %137 = sbr.rel (%p134) target = $region28
    $region27: #{color_transfer.1} parent=5 // pred_region
      %s138 = ssub.s32 %s8, 1
      %p139 = pneg %p41
      %p140 = pneg %p38
      %s141 = smul.u32 2, %s18
      %p142 = scmp.lt.s32.totalorder %s17, 1
      %s143 = scalar_select %p142, %s17, 1
      %p144 = scmp.lt.s32.totalorder %s141, 1
      %s145 = scalar_select %p144, %s141, 1
      %s146 = smul.addr %s143, 4
      %s147 = sadd.s32 %s145, %s146
      %s148 = smul.addr %s147, 8
      %s149 = scalar_lea.vmem %s1, %s148
      %p150 = pneg %p69
      %p151 = pneg %p66
      %p152 = pneg %p97
      %p153 = pneg %p94
      %s154 = smul.u32 2, %s18
      %p155 = scmp.lt.s32.totalorder %s17, 1
      %s156 = scalar_select %p155, %s17, 1
      %p157 = scmp.lt.s32.totalorder %s154, 1
      %s158 = scalar_select %p157, %s154, 1
      %s159 = smul.addr %s156, 4
      %s160 = sadd.s32 %s158, %s159
      %s161 = smul.addr %s160, 8
      %s162 = scalar_lea.vmem %s2, %s161
      %s163 = smul.u32 2, %s18
      %p164 = scmp.lt.s32.totalorder %s17, 1
      %s165 = scalar_select %p164, %s17, 1
      %p166 = scmp.lt.s32.totalorder %s163, 1
      %s167 = scalar_select %p166, %s163, 1
      %s168 = smul.addr %s165, 4
      %s169 = sadd.s32 %s167, %s168
      %s170 = smul.addr %s169, 8
      %s171 = scalar_lea.vmem %s1, %s170
      %s172 = smul.u32 2, %s18
      %s173 = smul.u32 2, %s18
      %p174 = scmp.lt.s32.totalorder %s17, 1
      %s175 = scalar_select %p174, %s17, 1
      %p176 = scmp.lt.s32.totalorder %s173, 1
      %s177 = scalar_select %p176, %s173, 1
      %s178 = smul.addr %s175, 4
      %s179 = sadd.s32 %s177, %s178
      %s180 = smul.addr %s179, 8
      %s181 = scalar_lea.vmem %s2, %s180
      %s182 = smul.u32 2, %s18
      %v183 = vld [vmem:[%s0] sm:$0xff]
      %v184 = vld [vmem:[%s0 + $0x8] sm:$0xff]
      %v185 = vld [vmem:[%s171] sm:$0xff]
      %v186 = vld [vmem:[%s171 + $0x8] sm:$0xff]
      %v187 = vld [vmem:[%s171 + $0x10] sm:$0xff]
      %v188 = vld [vmem:[%s171 + $0x18] sm:$0xff]
      %vm189 = vcmask 130048
      %v191 = vsel %vm189, %v183, 0
      %v194 = vsel %vm189, %v184, 0
      %196 = vmatprep.subr.mxu0 %v186
      %197 = vmatpush1.msra.mxu0 %v185
      %198 = vmatprep.subr.mxu0 %v188
      %199 = vmatpush1.msra.mxu0 %v187
      %200 = vmatprep.subr.mxu0 0.0
      %201 = vmatpush1.msra.mxu0 0.0
      %202 = vmatprep.subr.mxu0 0.0
      %203 = vmatpush1.msra.mxu0 0.0
      %204 = vmatprep.subr.mxu0 0.0
      %205 = vmatpush1.msra.mxu0 0.0
      %206 = vmatprep.subr.mxu0 0.0
      %207 = vmatpush1.msra.mxu0 0.0
      %208 = vmatprep.subr.mxu0 0.0
      %209 = vmatpush1.msra.mxu0 0.0
      %210 = vmatprep.subr.mxu0 0.0
      %211 = vmatpush1.msra.mxu0 0.0
      %212 = vmatprep.subr.mxu0 0.0
      %213 = vmatpush1.msra.mxu0 0.0
      %214 = vmatprep.subr.mxu0 0.0
      %215 = vmatpush1.msra.mxu0 0.0
      %216 = vmatprep.subr.mxu0 0.0
      %217 = vmatpush1.msra.mxu0 0.0
      %218 = vmatprep.subr.mxu0 0.0
      %219 = vmatpush1.msra.mxu0 0.0
      %220 = vmatprep.subr.mxu0 0.0
      %221 = vmatpush1.msra.mxu0 0.0
      %222 = vmatprep.subr.mxu0 0.0
      %223 = vmatpush1.msra.mxu0 0.0
      %224 = vmatprep.subr.mxu0 0.0
      %225 = vmatpush1.msra.mxu0 0.0
      %226 = vmatprep.subr.mxu0 0.0
      %227 = vmatpush1.msra.mxu0 0.0
      %228 = vmatprep.subr.mxu0 0.0
      %229 = vmatpush1.msra.mxu0 0.0
      %230 = vmatprep.subr.mxu0 0.0
      %231 = vmatpush1.msra.mxu0 0.0
      %232 = vmatprep.subr.mxu0 0.0
      %233 = vmatpush1.msra.mxu0 0.0
      %234 = vmatprep.subr.mxu0 0.0
      %235 = vmatpush1.msra.mxu0 0.0
      %236 = vmatprep.subr.mxu0 0.0
      %237 = vmatpush1.msra.mxu0 0.0
      %238 = vmatprep.subr.mxu0 0.0
      %239 = vmatpush1.msra.mxu0 0.0
      %240 = vmatprep.subr.mxu0 0.0
      %241 = vmatpush1.msra.mxu0 0.0
      %242 = vmatprep.subr.mxu0 0.0
      %243 = vmatpush1.msra.mxu0 0.0
      %244 = vmatprep.subr.mxu0 0.0
      %245 = vmatpush1.msra.mxu0 0.0
      %246 = vmatprep.subr.mxu0 0.0
      %247 = vmatpush1.msra.mxu0 0.0
      %248 = vmatprep.subr.mxu0 0.0
      %249 = vmatpush1.msra.mxu0 0.0
      %250 = vmatprep.subr.mxu0 0.0
      %251 = vmatpush1.msra.mxu0 0.0
      %252 = vmatprep.subr.mxu0 0.0
      %253 = vmatpush1.msra.mxu0 0.0
      %254 = vmatprep.subr.mxu0 0.0
      %255 = vmatpush1.msra.mxu0 0.0
      %256 = vmatprep.subr.mxu0 0.0
      %257 = vmatpush1.msra.mxu0 0.0
      %258 = vmatprep.subr.mxu0 0.0
      %259 = vmatpush1.msra.mxu0 0.0
      %260 = vmatprep.mubr.f32.mxu0 0.0
      %261 = vmatmul.mubr.f32.gmra.mrb[0].mxu0 %v191
      %v262 = vpop.f32.mrb[0].mxu0
      %v263 = vadd.f32 0.0, %v262
      %v264 = vpop.f32.mrb[0].mxu0
      %v265 = vadd.f32 0.0, %v264
      %266 = vmatprep.mubr.f32.mxu0 0.0
      %267 = vmatmul.mubr.f32.gmra.mrb[0].mxu0 %v194
      %v268 = vpop.f32.mrb[0].mxu0
      %v269 = vadd.f32 0.0, %v268
      %v270 = vpop.f32.mrb[0].mxu0
      %v271 = vadd.f32 0.0, %v270
      %272 = vdwg.mxu0
      %273 = vst [vmem:[%s181] sm:$0xff] %v263
      %274 = vst [vmem:[%s181 + $0x8] sm:$0xff] %v265
      %275 = vst [vmem:[%s181 + $0x10] sm:$0xff] %v269
      %276 = vst [vmem:[%s181 + $0x18] sm:$0xff] %v271
      %s277 = smul.u32 2, %s18
      %p278 = scmp.lt.s32.totalorder %s17, 1
      %s279 = scalar_select %p278, %s17, 1
      %p280 = scmp.lt.s32.totalorder %s277, 1
      %s281 = scalar_select %p280, %s277, 1
      %s282 = smul.addr %s279, 4
      %s283 = sadd.s32 %s281, %s282
      %s284 = smul.addr %s283, 8
      %s285 = scalar_lea.vmem %s2, %s284
      // Predicated region
      $region29: #{color_transfer.1} parent=27 // pred_check
        %p286 = pneg %p94
      $region30: #{color_transfer.1} parent=27 // pred_check_branch
        %288 = sbr.rel (%p286) target = $region32
      $region31: #{color_transfer.1} parent=27 // pred_region
        %s289 = smul.u32 2, %s18
      $region32: #{color_transfer.1} parent=27 // pred_fallthru
        _
    $region28: #{color_transfer.1} parent=5 // pred_fallthru
      _
    %p290 = scmp.le.s32.totalorder 2, %s8
    // Predicated region
    $region33: #{color_transfer.1} parent=5 // pred_check
      %p291 = pneg %p290
    $region34: #{color_transfer.1} parent=5 // pred_check_branch
      %293 = sbr.rel (%p291) target = $region36
    $region35: #{color_transfer.1} parent=5 // pred_region
      %s294 = ssub.s32 %s8, 2
      // Predicated region
      $region37: #{color_transfer.1} parent=35 // pred_check
        %p295 = pneg %p100
      $region38: #{color_transfer.1} parent=35 // pred_check_branch
        %297 = sbr.rel (%p295) target = $region40
      $region39: #{color_transfer.1} parent=35 // pred_region
        %s298 = smul.u32 2, %s20
        %p299 = scmp.lt.s32.totalorder %s19, 1
        %s300 = scalar_select %p299, %s19, 1
        %p301 = scmp.lt.s32.totalorder %s298, 1
        %s302 = scalar_select %p301, %s298, 1
        %s303 = smul.addr %s300, 4
        %s304 = sadd.s32 %s302, %s303
        %s305 = smul.addr %s304, 8
        %s306 = scalar_lea.vmem %s2, %s305
      $region40: #{color_transfer.1} parent=35 // pred_fallthru
        _
    $region36: #{color_transfer.1} parent=5 // pred_fallthru
      _
  $region6: #{color_transfer.1} parent=0 // loop_footer
    %s12 = sadd.s32 1, %s8
  $region7: #{color_transfer.1} parent=0 // loop_footer_branch
    %7 = sbr.rel target = $region3
  $region8: #{color_transfer.1} parent=0 // loop_exit
    _

</llo_original>
